<compile_context>
chip_gen: v5e
topology: v5e:2x2
jax: 0.10.0
libtpu: 0.0.40
codegen_flags: <defaults>
</compile_context>

<pallas_src>
import jax
import jax.numpy as jnp
from jax.experimental import pallas as pl
from jax.experimental.pallas import tpu as pltpu


# ---- parameter slab layout (rows at multiples of 8, 128 lanes wide) ------------
# rows   0:20 , cols 0:64  -> w1^T  (20, 64)
# row   24    , cols 0:64  -> b1    (1, 64)
# rows  32:96 , cols 0:32  -> w2^T  (64, 32)
# row   96    , cols 0:32  -> b2    (1, 32)
# rows 104:136, cols 0:16  -> w3^T  (32, 16)
# row  136    , cols 0:16  -> b3    (1, 16)
_SLAB_ROWS = 144
_SLAB_COLS = 128


def pack_params(w1, b1, w2, b2, w3, b3):
    """One-time packing of PyTorch-layout params into a single (144,128) f32 slab."""
    p = jnp.zeros((_SLAB_ROWS, _SLAB_COLS), dtype=jnp.float32)
    p = p.at[0:20, 0:64].set(jnp.transpose(w1))      # (20, 64)
    p = p.at[24, 0:64].set(b1)                       # (64,)
    p = p.at[32:96, 0:32].set(jnp.transpose(w2))     # (64, 32)
    p = p.at[96, 0:32].set(b2)                       # (32,)
    p = p.at[104:136, 0:16].set(jnp.transpose(w3))   # (32, 16)
    p = p.at[136, 0:16].set(b3)                      # (16,)
    return p


def nestmlp_kernel(x_ref, p_ref, o_ref):
    # Whole forward pass for one batch tile; params slab is resident across tiles.
    x = x_ref[...]                                   # (tm, 20) f32

    w1 = p_ref[0:20, 0:64]                           # (20, 64)
    b1 = p_ref[24:25, 0:64]                          # (1, 64)
    w2 = p_ref[32:96, 0:32]                          # (64, 32)
    b2 = p_ref[96:97, 0:32]                          # (1, 32)
    w3 = p_ref[104:136, 0:16]                        # (32, 16)
    b3 = p_ref[136:137, 0:16]                        # (1, 16)

    h = jnp.maximum(jnp.dot(x, w1, preferred_element_type=jnp.float32) + b1, 0.0)
    h = jnp.maximum(jnp.dot(h, w2, preferred_element_type=jnp.float32) + b2, 0.0)
    o_ref[...] = jnp.dot(h, w3, preferred_element_type=jnp.float32) + b3


def nestmlp_forward(x, params_slab):
    """x: (N, 20) float32. params_slab: (144, 128) float32 from pack_params()."""
    n, d_in = x.shape
    d_out = 16

    # Batch tiling: one full-batch tile when small; 256-row tiles (multiple of 8,
    # ~20 KiB f32 input per tile) when N is large. Weights stay resident via the
    # constant index_map.
    if n > 256 and n % 256 == 0:
        tm = 256
    else:
        tm = n
    grid = (n // tm,)

    return pl.pallas_call(
        nestmlp_kernel,
        out_shape=jax.ShapeDtypeStruct((n, d_out), x.dtype),
        grid=grid,
        in_specs=[
            pl.BlockSpec((tm, d_in), lambda i: (i, 0)),
            pl.BlockSpec((_SLAB_ROWS, _SLAB_COLS), lambda i: (0, 0)),
        ],
        out_specs=pl.BlockSpec((tm, d_out), lambda i: (i, 0)),
        compiler_params=pltpu.CompilerParams(
            dimension_semantics=("parallel",),
        ),
    )(x, params_slab)


def nestmlp_reference(x, w1, b1, w2, b2, w3, b3):
    h = jnp.maximum(x @ w1.T + b1, 0.0)
    h = jnp.maximum(h @ w2.T + b2, 0.0)
    return h @ w3.T + b3


if __name__ == "__main__":
    key = jax.random.PRNGKey(0)
    k_x, k_w1, k_b1, k_w2, k_b2, k_w3, k_b3 = jax.random.split(key, 7)

    N, D_IN = 2, 20                                  # matches X = torch.rand(2, 20)
    x = jax.random.uniform(k_x, (N, D_IN), dtype=jnp.float32)

    def linear_init(kw, kb, d_out, d_in):
        # nn.Linear default: uniform in [-1/sqrt(d_in), 1/sqrt(d_in)]
        bound = 1.0 / (d_in ** 0.5)
        w = jax.random.uniform(kw, (d_out, d_in), minval=-bound, maxval=bound,
                               dtype=jnp.float32)
        b = jax.random.uniform(kb, (d_out,), minval=-bound, maxval=bound,
                               dtype=jnp.float32)
        return w, b

    w1, b1 = linear_init(k_w1, k_b1, 64, 20)
    w2, b2 = linear_init(k_w2, k_b2, 32, 64)
    w3, b3 = linear_init(k_w3, k_b3, 16, 32)

    params = pack_params(w1, b1, w2, b2, w3, b3)     # one-time packing

    out = nestmlp_forward(x, params)
    out = jax.block_until_ready(out)

    ref = nestmlp_reference(x, w1, b1, w2, b2, w3, b3)
    assert out.shape == (N, 16) and out.dtype == jnp.float32
    assert jnp.allclose(out, ref, atol=1e-5, rtol=1e-5), "mismatch vs pure-JAX reference"

    print("KERNEL_OK")
</pallas_src>

<mosaic_0001>
module attributes {stable_mosaic.version = 11 : i64} {
  func.func @nestmlp_kernel(%arg0: i32, %arg1: memref<2x20xf32, #tpu.memory_space<vmem>>, %arg2: memref<144x128xf32, #tpu.memory_space<vmem>>, %arg3: memref<2x16xf32, #tpu.memory_space<vmem>>) attributes {dimension_semantics = [#tpu.dimension_semantics<parallel>], iteration_bounds = array<i64: 1>, scalar_prefetch = 0 : i64, scratch_operands = 0 : i64, tpu.core_type = #tpu.core_type<tc>, window_params = [{transform_indices = @transform_0, window_bounds = array<i64: 2, 20>}, {pipeline_mode = #tpu.pipeline_mode<synchronous>, transform_indices = @transform_1, window_bounds = array<i64: 144, 128>}, {transform_indices = @transform_2, window_bounds = array<i64: 2, 16>}]} {
    %c0 = arith.constant 0 : index
    %c0_0 = arith.constant 0 : index
    %0 = vector.load %arg1[%c0, %c0_0] : memref<2x20xf32, #tpu.memory_space<vmem>>, vector<2x20xf32>
    %c0_1 = arith.constant 0 : index
    %c0_2 = arith.constant 0 : index
    %1 = vector.load %arg2[%c0_1, %c0_2] : memref<144x128xf32, #tpu.memory_space<vmem>>, vector<20x64xf32>
    %c24 = arith.constant 24 : index
    %c0_3 = arith.constant 0 : index
    %2 = vector.load %arg2[%c24, %c0_3] : memref<144x128xf32, #tpu.memory_space<vmem>>, vector<1x64xf32>
    %c32 = arith.constant 32 : index
    %c0_4 = arith.constant 0 : index
    %3 = vector.load %arg2[%c32, %c0_4] : memref<144x128xf32, #tpu.memory_space<vmem>>, vector<64x32xf32>
    %c96 = arith.constant 96 : index
    %c0_5 = arith.constant 0 : index
    %4 = vector.load %arg2[%c96, %c0_5] : memref<144x128xf32, #tpu.memory_space<vmem>>, vector<1x32xf32>
    %c104 = arith.constant 104 : index
    %c0_6 = arith.constant 0 : index
    %5 = vector.load %arg2[%c104, %c0_6] : memref<144x128xf32, #tpu.memory_space<vmem>>, vector<32x16xf32>
    %c136 = arith.constant 136 : index
    %c0_7 = arith.constant 0 : index
    %6 = vector.load %arg2[%c136, %c0_7] : memref<144x128xf32, #tpu.memory_space<vmem>>, vector<1x16xf32>
    %cst = arith.constant dense<0.000000e+00> : vector<2x64xf32>
    %7 = tpu.matmul %0, %1, %cst {dimension_numbers = #tpu.dot_dimension_numbers<[1], [0], [0], [1], [0, 0, 1, 1], [], []>} : vector<2x20xf32>, vector<20x64xf32>, vector<2x64xf32> -> vector<2x64xf32>
    %8 = vector.broadcast %2 : vector<1x64xf32> to vector<2x64xf32>
    %9 = arith.addf %7, %8 : vector<2x64xf32>
    %cst_8 = arith.constant 0.000000e+00 : f32
    %10 = vector.broadcast %cst_8 : f32 to vector<2x64xf32>
    %11 = arith.maximumf %9, %10 : vector<2x64xf32>
    %cst_9 = arith.constant dense<0.000000e+00> : vector<2x32xf32>
    %12 = tpu.matmul %11, %3, %cst_9 {dimension_numbers = #tpu.dot_dimension_numbers<[1], [0], [0], [1], [0, 0, 1, 1], [], []>} : vector<2x64xf32>, vector<64x32xf32>, vector<2x32xf32> -> vector<2x32xf32>
    %13 = vector.broadcast %4 : vector<1x32xf32> to vector<2x32xf32>
    %14 = arith.addf %12, %13 : vector<2x32xf32>
    %cst_10 = arith.constant 0.000000e+00 : f32
    %15 = vector.broadcast %cst_10 : f32 to vector<2x32xf32>
    %16 = arith.maximumf %14, %15 : vector<2x32xf32>
    %cst_11 = arith.constant dense<0.000000e+00> : vector<2x16xf32>
    %17 = tpu.matmul %16, %5, %cst_11 {dimension_numbers = #tpu.dot_dimension_numbers<[1], [0], [0], [1], [0, 0, 1, 1], [], []>} : vector<2x32xf32>, vector<32x16xf32>, vector<2x16xf32> -> vector<2x16xf32>
    %18 = vector.broadcast %6 : vector<1x16xf32> to vector<2x16xf32>
    %19 = arith.addf %17, %18 : vector<2x16xf32>
    %c0_12 = arith.constant 0 : index
    %c0_13 = arith.constant 0 : index
    %20 = vector.load %arg3[%c0_12, %c0_13] : memref<2x16xf32, #tpu.memory_space<vmem>>, vector<2x16xf32>
    tpu.vector_store %arg3[%c0_12, %c0_13], %19 {strides = array<i32>} : memref<2x16xf32, #tpu.memory_space<vmem>>, vector<2x16xf32>,
    return
  }
  func.func @transform_0(%arg0: i32) -> (i32, i32) {
    %c0_i32 = arith.constant 0 : i32
    %c0_i32_0 = arith.constant 0 : i32
    return %arg0, %c0_i32 : i32, i32
  }
  func.func @transform_1(%arg0: i32) -> (i32, i32) {
    %c0_i32 = arith.constant 0 : i32
    %c0_i32_0 = arith.constant 0 : i32
    %c0_i32_1 = arith.constant 0 : i32
    return %c0_i32, %c0_i32_0 : i32, i32
  }
  func.func @transform_2(%arg0: i32) -> (i32, i32) {
    %c0_i32 = arith.constant 0 : i32
    %c0_i32_0 = arith.constant 0 : i32
    return %arg0, %c0_i32 : i32, i32
  }
}

</mosaic_0001>

<llo_original>
// kernel: tpu_custom_call.1
$region0: #{tpu_custom_call.1}
  #allocation0 [shape = 'u32[]', space=smem, size = 0x4, offset = 0x4, fixed_abs, tag = 'smem constant byte address 0x4 - core index']
  #allocation1 [shape = 'u32[72,128]{1,0:T(1,128)}', space=vmem, size = 0x9000, scoped, tag = 'internal scratch']
  %s0 = inlined_call_operand.hbm [shape: f32[2,20], index: 0, kind: input, shape index: {}]
  %s1 = inlined_call_operand.hbm [shape: f32[144,128], index: 1, kind: input, shape index: {}]
  %s2 = inlined_call_operand.hbm [shape: f32[2,16], index: 2, kind: output, shape index: {}]
  %s3 = sld [smem:[#allocation0]]
  $region26: #{tpu_custom_call.1} parent=0
    _
  %s5 = ssub.s32 1, %s3
  %s6 = scalar_select 0, %s5, %s3
  $region1: #{tpu_custom_call.1} parent=0
    #allocation2 [shape = 'u8[1024]{0}', space=vmem, size = 0x400, scoped, tag = 'input window, operand 0, single buffered']
    #allocation3 [shape = 's32[1]{0}', space=sflag, size = 0x4, scoped, tag = 'scoped memory for tpu_custom_call.1']
    #allocation4 [shape = 's32[1]{0}', space=sflag, size = 0x4, scoped, tag = 'scoped memory for tpu_custom_call.1']
    #allocation5 [shape = 'u8[73728]{0}', space=vmem, size = 0x12000, scoped, tag = 'input window, operand 1, single buffered']
    #allocation6 [shape = 's32[1]{0}', space=sflag, size = 0x4, scoped, tag = 'scoped memory for tpu_custom_call.1']
    #allocation7 [shape = 'u8[1024]{0}', space=vmem, size = 0x400, scoped, tag = 'output window, operand 0, single buffered']
    %7 = vsyncpa [#allocation3], 0
    %8 = vsyncpa [#allocation6], 0
    %9 = vsyncpa [#allocation4], 0
    // Predicated region
    $region2: #{tpu_custom_call.1} parent=1 // pred_check
      _
    $region3: #{tpu_custom_call.1} parent=1 // pred_check_branch
      %11 = sbr.rel (0) target = $region5
    $region4: #{tpu_custom_call.1} parent=1 // pred_region
      %13 = vsyncadd [#allocation3], 0
      %s15 = sshll.u32 %s0, 4
      %s16 = int_to_ptr.hbm [resolvable:$true] %s15
      %s17 = sshll.u32 [#allocation2], 4
      %s18 = int_to_ptr.vmem [resolvable:$true] %s17
      %20 = dma.hbm_to_vmem [thread:$0]  %s16, 32, %s18, [#allocation3]
    $region5: #{tpu_custom_call.1} parent=1 // pred_fallthru
      _
    // Predicated region
    $region6: #{tpu_custom_call.1} parent=1 // pred_check
      _
    $region7: #{tpu_custom_call.1} parent=1 // pred_check_branch
      %22 = sbr.rel (0) target = $region9
    $region8: #{tpu_custom_call.1} parent=1 // pred_region
      %24 = vsyncadd [#allocation6], 0
      %s25 = sshll.u32 %s1, 4
      %s26 = int_to_ptr.hbm [resolvable:$true] %s25
      %s27 = sshll.u32 [#allocation5], 4
      %s28 = int_to_ptr.vmem [resolvable:$true] %s27
      %33 = dma.hbm_to_vmem [thread:$0]  %s26, 2304, %s28, [#allocation6], 128, 128, 8
    $region9: #{tpu_custom_call.1} parent=1 // pred_fallthru
      _
    // Predicated region
    $region10: #{tpu_custom_call.1} parent=1 // pred_check
      _
    $region11: #{tpu_custom_call.1} parent=1 // pred_check_branch
      %35 = sbr.rel (0) target = $region13
    $region12: #{tpu_custom_call.1} parent=1 // pred_region
      %37 = dma.done [#allocation3], 32
    $region13: #{tpu_custom_call.1} parent=1 // pred_fallthru
      _
    // Predicated region
    $region14: #{tpu_custom_call.1} parent=1 // pred_check
      _
    $region15: #{tpu_custom_call.1} parent=1 // pred_check_branch
      %39 = sbr.rel (0) target = $region17
    $region16: #{tpu_custom_call.1} parent=1 // pred_region
      %41 = dma.done [#allocation6], 2304
    $region17: #{tpu_custom_call.1} parent=1 // pred_fallthru
      _
    %v42 = vld [vmem:[#allocation2] sm:$0x3]
    %v43 = vld [vmem:[#allocation5] sm:$0xff]
    %v44 = vld [vmem:[#allocation5 + $0x8] sm:$0xff]
    %v45 = vld [vmem:[#allocation5 + $0x10] sm:$0xf]
    %v46 = vld [vmem:[#allocation5 + $0x18] sm:$0x1]
    %v47 = vld [vmem:[#allocation5 + $0x20] sm:$0xff]
    %v48 = vld [vmem:[#allocation5 + $0x28] sm:$0xff]
    %v49 = vld [vmem:[#allocation5 + $0x30] sm:$0xff]
    %v50 = vld [vmem:[#allocation5 + $0x38] sm:$0xff]
    %v51 = vld [vmem:[#allocation5 + $0x40] sm:$0xff]
    %v52 = vld [vmem:[#allocation5 + $0x48] sm:$0xff]
    %v53 = vld [vmem:[#allocation5 + $0x50] sm:$0xff]
    %v54 = vld [vmem:[#allocation5 + $0x58] sm:$0xff]
    %v55 = vld [vmem:[#allocation5 + $0x60] sm:$0x1]
    %v56 = vld [vmem:[#allocation5 + $0x68] sm:$0xff]
    %v57 = vld [vmem:[#allocation5 + $0x70] sm:$0xff]
    %v58 = vld [vmem:[#allocation5 + $0x78] sm:$0xff]
    %v59 = vld [vmem:[#allocation5 + $0x80] sm:$0xff]
    %v60 = vld [vmem:[#allocation5 + $0x88] sm:$0x1]
    %v61 = vperm.slane %v46, 0
    %vm62 = vcmask 162816
    %v64 = vsel %vm62, %v42, 0
    %vm66 = vcmask 1043456
    %v68 = vsel %vm66, %v45, 0
    %70 = vmatpush.msra.mxu0 0.0
    %71 = vmatpush.msra.mxu0 0.0
    %72 = vmatpush.msra.mxu0 0.0
    %73 = vmatpush.msra.mxu0 0.0
    %74 = vmatpush.msra.mxu0 0.0
    %75 = vmatpush.msra.mxu0 0.0
    %76 = vmatpush.msra.mxu0 0.0
    %77 = vmatpush.msra.mxu0 0.0
    %78 = vmatpush.msra.mxu0 0.0
    %79 = vmatpush.msra.mxu0 0.0
    %80 = vmatpush.msra.mxu0 0.0
    %81 = vmatpush.msra.mxu0 0.0
    %82 = vmatpush.msra.mxu0 0.0
    %83 = vmatpush.msra.mxu0 %v68
    %84 = vmatpush.msra.mxu0 %v44
    %85 = vmatpush.msra.mxu0 %v43
    %86 = vmatmul.f32.gmra.mxu0 %v64
    %v87 = vpop.f32.mrf.mxu0
    %v88 = vadd.f32 %v61, %v87
    %89 = vdwg.mxu0
    %v90 = vmax.f32 %v88, 0.0
    %v91 = vperm.slane %v55, 0
    %vm92 = vcmask 523264
    %v94 = vsel %vm92, %v90, 0
    %96 = vmatpush.msra.mxu0 0.0
    %97 = vmatpush.msra.mxu0 0.0
    %98 = vmatpush.msra.mxu0 0.0
    %99 = vmatpush.msra.mxu0 0.0
    %100 = vmatpush.msra.mxu0 0.0
    %101 = vmatpush.msra.mxu0 0.0
    %102 = vmatpush.msra.mxu0 0.0
    %103 = vmatpush.msra.mxu0 0.0
    %104 = vmatpush.msra.mxu0 %v54
    %105 = vmatpush.msra.mxu0 %v53
    %106 = vmatpush.msra.mxu0 %v52
    %107 = vmatpush.msra.mxu0 %v51
    %108 = vmatpush.msra.mxu0 %v50
    %109 = vmatpush.msra.mxu0 %v49
    %110 = vmatpush.msra.mxu0 %v48
    %111 = vmatpush.msra.mxu0 %v47
    %112 = vmatmul.f32.gmra.mxu0 %v94
    %v113 = vpop.f32.mrf.mxu0
    %v114 = vadd.f32 %v91, %v113
    %115 = vdwg.mxu0
    %v116 = vmax.f32 %v114, 0.0
    %v117 = vperm.slane %v60, 0
    %vm118 = vcmask 261120
    %v120 = vsel %vm118, %v116, 0
    %122 = vmatpush.msra.mxu0 0.0
    %123 = vmatpush.msra.mxu0 0.0
    %124 = vmatpush.msra.mxu0 0.0
    %125 = vmatpush.msra.mxu0 0.0
    %126 = vmatpush.msra.mxu0 0.0
    %127 = vmatpush.msra.mxu0 0.0
    %128 = vmatpush.msra.mxu0 0.0
    %129 = vmatpush.msra.mxu0 0.0
    %130 = vmatpush.msra.mxu0 0.0
    %131 = vmatpush.msra.mxu0 0.0
    %132 = vmatpush.msra.mxu0 0.0
    %133 = vmatpush.msra.mxu0 0.0
    %134 = vmatpush.msra.mxu0 %v59
    %135 = vmatpush.msra.mxu0 %v58
    %136 = vmatpush.msra.mxu0 %v57
    %137 = vmatpush.msra.mxu0 %v56
    %138 = vmatmul.f32.gmra.mxu0 %v120
    %v139 = vpop.f32.mrf.mxu0
    %v140 = vadd.f32 %v117, %v139
    %141 = vdwg.mxu0
    %vm142 = vcmask 123904
    %143 = vst.msk [vmem:[#allocation7] sm:$0x3] %vm142, %v140
    // Predicated region
    $region18: #{tpu_custom_call.1} parent=1 // pred_check
      _
    $region19: #{tpu_custom_call.1} parent=1 // pred_check_branch
      %145 = sbr.rel (0) target = $region21
    $region20: #{tpu_custom_call.1} parent=1 // pred_region
      %147 = vsyncadd [#allocation4], 0
      %s149 = sshll.u32 [#allocation7], 4
      %s150 = int_to_ptr.vmem [resolvable:$true] %s149
      %s151 = sshll.u32 %s2, 4
      %s152 = int_to_ptr.hbm [resolvable:$true] %s151
      %154 = dma.vmem_to_hbm [thread:$0]  %s150, 32, %s152, [#allocation4]
    $region21: #{tpu_custom_call.1} parent=1 // pred_fallthru
      _
    // Predicated region
    $region22: #{tpu_custom_call.1} parent=1 // pred_check
      _
    $region23: #{tpu_custom_call.1} parent=1 // pred_check_branch
      %156 = sbr.rel (0) target = $region25
    $region24: #{tpu_custom_call.1} parent=1 // pred_region
      %158 = dma.done [#allocation4], 32
    $region25: #{tpu_custom_call.1} parent=1 // pred_fallthru
      _
    %159 = vsyncpa [#allocation3], 1
    %160 = vsyncpa [#allocation6], 1
    %161 = vsyncpa [#allocation4], 1

</llo_original>
